<compile_context>
chip_gen: v6e
topology: v6e:2x2x1
jax: 0.10.0
libtpu: 0.0.40
codegen_flags: <defaults>
</compile_context>

<pallas_src>
import functools

import jax
import jax.numpy as jnp
import numpy as np
from jax.experimental import pallas as pl
from jax.experimental.pallas import tpu as pltpu

LANE = 128          # feature dims padded to a multiple of this (lane width)
SUBLANE_BF16 = 16   # batch padded to a multiple of this (bf16 sublane packing)
MAX_TM = 256        # max rows per grid step (MXU height on v6e/v7x)


def _round_up(n, m):
    return (n + m - 1) // m * m


# ---------------------------------------------------------------------------
# Pallas kernel: the whole MLP for one TM-row tile of the batch
# ---------------------------------------------------------------------------
def _mlp_fused_kernel(*refs, meta):
    """refs = (x, w0, b0, w1, b1, ..., w_{n-1}, b_{n-1}, out).

    meta is a static tuple of (activation, residual_src) per linear unit;
    residual_src indexes the activation list (acts[0] == x) of the tensor to
    add AFTER the activation (PyTorch ResidualBlock: relu(bn(fc2(...))) + x),
    or None.  Weights are bf16 with BN already folded in; biases are f32;
    matmuls accumulate in f32.
    """
    n = len(meta)
    x_ref = refs[0]
    o_ref = refs[1 + 2 * n]

    acts = [x_ref[...].astype(jnp.float32)]
    for i, (act, res_src) in enumerate(meta):
        w = refs[1 + 2 * i][...]                       # bf16 [din_pad, dout_pad]
        b = refs[2 + 2 * i][...]                       # f32  [1, dout_pad]
        z = jnp.dot(acts[i].astype(jnp.bfloat16), w,
                    preferred_element_type=jnp.float32) + b
        if act == "relu":
            z = jnp.maximum(z, 0.0)
        elif act == "sigmoid":
            z = jax.nn.sigmoid(z)
        if res_src is not None:
            z = z + acts[res_src]                      # residual add after activation
        acts.append(z)
    o_ref[...] = acts[-1].astype(o_ref.dtype)


# ---------------------------------------------------------------------------
# One-time pack step (hoisted out of the forward): fold BN, transpose,
# pad to lane-dense shapes, cast weights to bf16.
# ---------------------------------------------------------------------------
def pack_mlp_params(units):
    dims = [int(units[0]["w"].shape[1])] + [int(u["w"].shape[0]) for u in units]
    pdims = [_round_up(d, LANE) for d in dims]

    weights, biases, meta, ldims = [], [], [], []
    for i, u in enumerate(units):
        w = u["w"].astype(jnp.float32)                 # [out, in]
        s = u["s"].astype(jnp.float32)
        t = u["t"].astype(jnp.float32)
        # y = (x W^T + b)*s + t  ==  x (W*s)^T + (b*s + t)
        w_fold = (w * s[:, None]).T                    # [in, out]
        b_fold = u["b"].astype(jnp.float32) * s + t

        wp = jnp.zeros((pdims[i], pdims[i + 1]), jnp.bfloat16)
        wp = wp.at[: w_fold.shape[0], : w_fold.shape[1]].set(
            w_fold.astype(jnp.bfloat16))
        bp = jnp.zeros((1, pdims[i + 1]), jnp.float32)
        bp = bp.at[:, : b_fold.shape[0]].set(b_fold)

        weights.append(wp)
        biases.append(bp)
        meta.append((u["act"], u["res_src"]))
        ldims.append((dims[i], dims[i + 1]))

    packed = dict(weights=tuple(weights), biases=tuple(biases))
    static = dict(meta=tuple(meta), ldims=tuple(ldims))
    return packed, static


# ---------------------------------------------------------------------------
# Jitted forward: pad x, single pallas_call with a parallel batch grid axis
# ---------------------------------------------------------------------------
@functools.partial(jax.jit, static_argnames=("meta", "ldims"))
def _mlp_forward_jit(x, weights, biases, *, meta, ldims):
    batch, in_dim = x.shape
    in_pad = weights[0].shape[0]
    out_pad = weights[-1].shape[1]
    out_dim = ldims[-1][1]

    tm = min(_round_up(batch, SUBLANE_BF16), MAX_TM)
    bpad = _round_up(batch, tm)

    # Zero-pad x; padded lanes stay zero through every layer because padded
    # weight rows/cols and biases are zero and relu(0) == 0.
    xp = jnp.pad(x.astype(jnp.float32),
                 ((0, bpad - batch), (0, in_pad - in_dim)))

    operands = [xp]
    in_specs = [pl.BlockSpec((tm, in_pad), lambda i: (i, 0))]
    for w, b in zip(weights, biases):
        din_p, dout_p = w.shape
        operands += [w, b]
        # Constant index_map -> weight/bias blocks fetched once, stay resident
        # in VMEM across the whole batch grid.
        in_specs += [pl.BlockSpec((din_p, dout_p), lambda i: (0, 0)),
                     pl.BlockSpec((1, dout_p), lambda i: (0, 0))]
    out_specs = pl.BlockSpec((tm, out_pad), lambda i: (i, 0))

    # Cost estimate on LOGICAL (unpadded) dims.
    flops = sum(2 * batch * din * dout for din, dout in ldims)
    transcendentals = batch * out_dim if meta[-1][0] == "sigmoid" else 0
    bytes_accessed = (batch * in_dim * 4
                      + sum(din * dout * 2 + dout * 4 for din, dout in ldims)
                      + batch * out_dim * 4)

    # Explicit VMEM budget (resident weights/biases + double-buffered x/out
    # tiles + f32 activations).  Only raise the scoped limit when needed.
    vmem_needed = (
        sum(w.size * w.dtype.itemsize for w in weights)
        + sum(b.size * b.dtype.itemsize for b in biases)
        + 2 * tm * in_pad * 4 + 2 * tm * out_pad * 4
        + sum(tm * w.shape[1] * 4 for w in weights) + tm * in_pad * 4
    )
    vmem_limit = None
    if vmem_needed > (16 << 20):  # smallest default scoped limit (v5e)
        vmem_limit = min(_round_up(vmem_needed, 1 << 20) + (4 << 20), 64 << 20)

    kernel = functools.partial(_mlp_fused_kernel, meta=meta)
    out = pl.pallas_call(
        kernel,
        out_shape=jax.ShapeDtypeStruct((bpad, out_pad), jnp.float32),
        grid=(bpad // tm,),
        in_specs=in_specs,
        out_specs=out_specs,
        compiler_params=pltpu.CompilerParams(
            dimension_semantics=("parallel",),
            vmem_limit_bytes=vmem_limit,
        ),
        cost_estimate=pl.CostEstimate(
            flops=flops,
            transcendentals=transcendentals,
            bytes_accessed=bytes_accessed,
        ),
    )(*operands)
    return out[:batch, :out_dim]


def mlp_fused_forward(x, packed, static):
    return _mlp_forward_jit(x, packed["weights"], packed["biases"],
                            meta=static["meta"], ldims=static["ldims"])


# ---------------------------------------------------------------------------
# Deterministic parameter construction (mirrors the PyTorch __init__ shapes)
# ---------------------------------------------------------------------------
def _make_linear(key, fan_in, fan_out):
    k1, k2 = jax.random.split(key)
    bound = 1.0 / float(np.sqrt(fan_in))
    w = jax.random.uniform(k1, (fan_out, fan_in), jnp.float32, -bound, bound)
    b = jax.random.uniform(k2, (fan_out,), jnp.float32, -bound, bound)
    return w, b


def _make_bn(key, dim, eps=1e-5):
    """BN as per-feature (scale, shift) for inference (running stats)."""
    k1, k2, k3, k4 = jax.random.split(key, 4)
    gamma = jax.random.uniform(k1, (dim,), jnp.float32, 0.5, 1.5)
    beta = jax.random.uniform(k2, (dim,), jnp.float32, -0.5, 0.5)
    running_mean = jax.random.uniform(k3, (dim,), jnp.float32, -0.5, 0.5)
    running_var = jax.random.uniform(k4, (dim,), jnp.float32, 0.5, 1.5)
    scale = gamma / jnp.sqrt(running_var + eps)
    shift = beta - running_mean * scale
    return scale, shift


def init_mlp_params(key, in_dim, hidden_dims, out_dim):
    """Flat list of linear 'units', each: w [out,in], b, BN (s,t), act, res_src."""
    units = []
    prev = in_dim
    for h in hidden_dims:
        key, kl, kb = jax.random.split(key, 3)
        w, b = _make_linear(kl, prev, h)
        s, t = _make_bn(kb, h)
        units.append(dict(w=w, b=b, s=s, t=t, act="relu", res_src=None))
        if h == prev:  # ResidualBlock(h)
            src = len(units)  # activation index of the block's input
            for j in range(2):
                key, kl, kb = jax.random.split(key, 3)
                w, b = _make_linear(kl, h, h)
                s, t = _make_bn(kb, h)
                units.append(dict(w=w, b=b, s=s, t=t, act="relu",
                                  res_src=src if j == 1 else None))
        prev = h
    key, kl = jax.random.split(key)
    w, b = _make_linear(kl, prev, out_dim)
    act = "sigmoid" if out_dim == 1 else "none"
    units.append(dict(w=w, b=b,
                      s=jnp.ones((out_dim,), jnp.float32),
                      t=jnp.zeros((out_dim,), jnp.float32),
                      act=act, res_src=None))
    return units


# ---------------------------------------------------------------------------
# Pure-JAX reference (same inference semantics, unfolded BN) for validation
# ---------------------------------------------------------------------------
def mlp_forward_ref(x, units):
    acts = [x]
    for u in units:
        z = (acts[-1] @ u["w"].T + u["b"]) * u["s"] + u["t"]
        if u["act"] == "relu":
            z = jnp.maximum(z, 0.0)
        elif u["act"] == "sigmoid":
            z = jax.nn.sigmoid(z)
        if u["res_src"] is not None:
            z = z + acts[u["res_src"]]
        acts.append(z)
    return acts[-1]


# ---------------------------------------------------------------------------
if __name__ == "__main__":
    key = jax.random.PRNGKey(0)
    in_dim, hidden_dims, out_dim = 16, (32, 32), 1  # 2nd hidden == prev -> ResidualBlock
    batch = 8

    key, kx, kp = jax.random.split(key, 3)
    x = jax.random.normal(kx, (batch, in_dim), jnp.float32)
    units = init_mlp_params(kp, in_dim, hidden_dims, out_dim)

    # One-time prep (BN fold / transpose / pad / bf16 cast) — hoisted out of
    # the forward path per the perf review.
    packed, static = pack_mlp_params(units)

    out = mlp_fused_forward(x, packed, static)
    out = jax.block_until_ready(out)

    ref = mlp_forward_ref(x, units)
    assert out.shape == (batch, out_dim)
    # bf16 weights + f32 accumulation: looser tolerance than a pure-f32 run.
    np.testing.assert_allclose(np.asarray(out), np.asarray(ref),
                               rtol=2e-2, atol=2e-2)

    print("KERNEL_OK")
</pallas_src>

<mosaic_0001>
module attributes {stable_mosaic.version = 11 : i64} {
  func.func @_mlp_fused_kernel(%arg0: i32, %arg1: memref<16x128xf32, #tpu.memory_space<vmem>>, %arg2: memref<128x128xbf16, #tpu.memory_space<vmem>>, %arg3: memref<1x128xf32, #tpu.memory_space<vmem>>, %arg4: memref<128x128xbf16, #tpu.memory_space<vmem>>, %arg5: memref<1x128xf32, #tpu.memory_space<vmem>>, %arg6: memref<128x128xbf16, #tpu.memory_space<vmem>>, %arg7: memref<1x128xf32, #tpu.memory_space<vmem>>, %arg8: memref<128x128xbf16, #tpu.memory_space<vmem>>, %arg9: memref<1x128xf32, #tpu.memory_space<vmem>>, %arg10: memref<128x128xbf16, #tpu.memory_space<vmem>>, %arg11: memref<1x128xf32, #tpu.memory_space<vmem>>, %arg12: memref<16x128xf32, #tpu.memory_space<vmem>>) attributes {dimension_semantics = [#tpu.dimension_semantics<parallel>], iteration_bounds = array<i64: 1>, scalar_prefetch = 0 : i64, scratch_operands = 0 : i64, tpu.core_type = #tpu.core_type<tc>, window_params = [{transform_indices = @transform_0, window_bounds = array<i64: 16, 128>}, {pipeline_mode = #tpu.pipeline_mode<synchronous>, transform_indices = @transform_1, window_bounds = array<i64: 128, 128>}, {pipeline_mode = #tpu.pipeline_mode<synchronous>, transform_indices = @transform_2, window_bounds = array<i64: 1, 128>}, {pipeline_mode = #tpu.pipeline_mode<synchronous>, transform_indices = @transform_3, window_bounds = array<i64: 128, 128>}, {pipeline_mode = #tpu.pipeline_mode<synchronous>, transform_indices = @transform_4, window_bounds = array<i64: 1, 128>}, {pipeline_mode = #tpu.pipeline_mode<synchronous>, transform_indices = @transform_5, window_bounds = array<i64: 128, 128>}, {pipeline_mode = #tpu.pipeline_mode<synchronous>, transform_indices = @transform_6, window_bounds = array<i64: 1, 128>}, {pipeline_mode = #tpu.pipeline_mode<synchronous>, transform_indices = @transform_7, window_bounds = array<i64: 128, 128>}, {pipeline_mode = #tpu.pipeline_mode<synchronous>, transform_indices = @transform_8, window_bounds = array<i64: 1, 128>}, {pipeline_mode = #tpu.pipeline_mode<synchronous>, transform_indices = @transform_9, window_bounds = array<i64: 128, 128>}, {pipeline_mode = #tpu.pipeline_mode<synchronous>, transform_indices = @transform_10, window_bounds = array<i64: 1, 128>}, {transform_indices = @transform_11, window_bounds = array<i64: 16, 128>}]} {
    %c0 = arith.constant 0 : index
    %c0_0 = arith.constant 0 : index
    %0 = vector.load %arg1[%c0, %c0_0] : memref<16x128xf32, #tpu.memory_space<vmem>>, vector<16x128xf32>
    %c0_1 = arith.constant 0 : index
    %c0_2 = arith.constant 0 : index
    %1 = vector.load %arg2[%c0_1, %c0_2] : memref<128x128xbf16, #tpu.memory_space<vmem>>, vector<128x128xbf16>
    %c0_3 = arith.constant 0 : index
    %c0_4 = arith.constant 0 : index
    %2 = vector.load %arg3[%c0_3, %c0_4] : memref<1x128xf32, #tpu.memory_space<vmem>>, vector<1x128xf32>
    %3 = arith.truncf %0 : vector<16x128xf32> to vector<16x128xbf16>
    %cst = arith.constant dense<0.000000e+00> : vector<16x128xf32>
    %4 = tpu.matmul %3, %1, %cst {dimension_numbers = #tpu.dot_dimension_numbers<[1], [0], [0], [1], [0, 0, 1, 1], [], []>} : vector<16x128xbf16>, vector<128x128xbf16>, vector<16x128xf32> -> vector<16x128xf32>
    %5 = vector.broadcast %2 : vector<1x128xf32> to vector<16x128xf32>
    %6 = arith.addf %4, %5 : vector<16x128xf32>
    %cst_5 = arith.constant 0.000000e+00 : f32
    %7 = vector.broadcast %cst_5 : f32 to vector<16x128xf32>
    %8 = arith.maximumf %6, %7 : vector<16x128xf32>
    %c0_6 = arith.constant 0 : index
    %c0_7 = arith.constant 0 : index
    %9 = vector.load %arg4[%c0_6, %c0_7] : memref<128x128xbf16, #tpu.memory_space<vmem>>, vector<128x128xbf16>
    %c0_8 = arith.constant 0 : index
    %c0_9 = arith.constant 0 : index
    %10 = vector.load %arg5[%c0_8, %c0_9] : memref<1x128xf32, #tpu.memory_space<vmem>>, vector<1x128xf32>
    %11 = arith.truncf %8 : vector<16x128xf32> to vector<16x128xbf16>
    %cst_10 = arith.constant dense<0.000000e+00> : vector<16x128xf32>
    %12 = tpu.matmul %11, %9, %cst_10 {dimension_numbers = #tpu.dot_dimension_numbers<[1], [0], [0], [1], [0, 0, 1, 1], [], []>} : vector<16x128xbf16>, vector<128x128xbf16>, vector<16x128xf32> -> vector<16x128xf32>
    %13 = vector.broadcast %10 : vector<1x128xf32> to vector<16x128xf32>
    %14 = arith.addf %12, %13 : vector<16x128xf32>
    %cst_11 = arith.constant 0.000000e+00 : f32
    %15 = vector.broadcast %cst_11 : f32 to vector<16x128xf32>
    %16 = arith.maximumf %14, %15 : vector<16x128xf32>
    %c0_12 = arith.constant 0 : index
    %c0_13 = arith.constant 0 : index
    %17 = vector.load %arg6[%c0_12, %c0_13] : memref<128x128xbf16, #tpu.memory_space<vmem>>, vector<128x128xbf16>
    %c0_14 = arith.constant 0 : index
    %c0_15 = arith.constant 0 : index
    %18 = vector.load %arg7[%c0_14, %c0_15] : memref<1x128xf32, #tpu.memory_space<vmem>>, vector<1x128xf32>
    %19 = arith.truncf %16 : vector<16x128xf32> to vector<16x128xbf16>
    %cst_16 = arith.constant dense<0.000000e+00> : vector<16x128xf32>
    %20 = tpu.matmul %19, %17, %cst_16 {dimension_numbers = #tpu.dot_dimension_numbers<[1], [0], [0], [1], [0, 0, 1, 1], [], []>} : vector<16x128xbf16>, vector<128x128xbf16>, vector<16x128xf32> -> vector<16x128xf32>
    %21 = vector.broadcast %18 : vector<1x128xf32> to vector<16x128xf32>
    %22 = arith.addf %20, %21 : vector<16x128xf32>
    %cst_17 = arith.constant 0.000000e+00 : f32
    %23 = vector.broadcast %cst_17 : f32 to vector<16x128xf32>
    %24 = arith.maximumf %22, %23 : vector<16x128xf32>
    %c0_18 = arith.constant 0 : index
    %c0_19 = arith.constant 0 : index
    %25 = vector.load %arg8[%c0_18, %c0_19] : memref<128x128xbf16, #tpu.memory_space<vmem>>, vector<128x128xbf16>
    %c0_20 = arith.constant 0 : index
    %c0_21 = arith.constant 0 : index
    %26 = vector.load %arg9[%c0_20, %c0_21] : memref<1x128xf32, #tpu.memory_space<vmem>>, vector<1x128xf32>
    %27 = arith.truncf %24 : vector<16x128xf32> to vector<16x128xbf16>
    %cst_22 = arith.constant dense<0.000000e+00> : vector<16x128xf32>
    %28 = tpu.matmul %27, %25, %cst_22 {dimension_numbers = #tpu.dot_dimension_numbers<[1], [0], [0], [1], [0, 0, 1, 1], [], []>} : vector<16x128xbf16>, vector<128x128xbf16>, vector<16x128xf32> -> vector<16x128xf32>
    %29 = vector.broadcast %26 : vector<1x128xf32> to vector<16x128xf32>
    %30 = arith.addf %28, %29 : vector<16x128xf32>
    %cst_23 = arith.constant 0.000000e+00 : f32
    %31 = vector.broadcast %cst_23 : f32 to vector<16x128xf32>
    %32 = arith.maximumf %30, %31 : vector<16x128xf32>
    %33 = arith.addf %32, %16 : vector<16x128xf32>
    %c0_24 = arith.constant 0 : index
    %c0_25 = arith.constant 0 : index
    %34 = vector.load %arg10[%c0_24, %c0_25] : memref<128x128xbf16, #tpu.memory_space<vmem>>, vector<128x128xbf16>
    %c0_26 = arith.constant 0 : index
    %c0_27 = arith.constant 0 : index
    %35 = vector.load %arg11[%c0_26, %c0_27] : memref<1x128xf32, #tpu.memory_space<vmem>>, vector<1x128xf32>
    %36 = arith.truncf %33 : vector<16x128xf32> to vector<16x128xbf16>
    %cst_28 = arith.constant dense<0.000000e+00> : vector<16x128xf32>
    %37 = tpu.matmul %36, %34, %cst_28 {dimension_numbers = #tpu.dot_dimension_numbers<[1], [0], [0], [1], [0, 0, 1, 1], [], []>} : vector<16x128xbf16>, vector<128x128xbf16>, vector<16x128xf32> -> vector<16x128xf32>
    %38 = vector.broadcast %35 : vector<1x128xf32> to vector<16x128xf32>
    %39 = arith.addf %37, %38 : vector<16x128xf32>
    %40 = arith.negf %39 : vector<16x128xf32>
    %41 = math.exp %40 : vector<16x128xf32>
    %cst_29 = arith.constant 1.000000e+00 : f32
    %42 = vector.broadcast %cst_29 : f32 to vector<16x128xf32>
    %43 = arith.addf %42, %41 : vector<16x128xf32>
    %44 = arith.divf %42, %43 : vector<16x128xf32>
    %c0_30 = arith.constant 0 : index
    %c0_31 = arith.constant 0 : index
    %45 = vector.load %arg12[%c0_30, %c0_31] : memref<16x128xf32, #tpu.memory_space<vmem>>, vector<16x128xf32>
    tpu.vector_store %arg12[%c0_30, %c0_31], %44 {strides = array<i32>} : memref<16x128xf32, #tpu.memory_space<vmem>>, vector<16x128xf32>,
    return
  }
  func.func @transform_0(%arg0: i32) -> (i32, i32) {
    %c0_i32 = arith.constant 0 : i32
    %c0_i32_0 = arith.constant 0 : i32
    return %arg0, %c0_i32 : i32, i32
  }
  func.func @transform_1(%arg0: i32) -> (i32, i32) {
    %c0_i32 = arith.constant 0 : i32
    %c0_i32_0 = arith.constant 0 : i32
    %c0_i32_1 = arith.constant 0 : i32
    return %c0_i32, %c0_i32_0 : i32, i32
  }
  func.func @transform_2(%arg0: i32) -> (i32, i32) {
    %c0_i32 = arith.constant 0 : i32
    %c0_i32_0 = arith.constant 0 : i32
    %c0_i32_1 = arith.constant 0 : i32
    return %c0_i32, %c0_i32_0 : i32, i32
  }
  func.func @transform_3(%arg0: i32) -> (i32, i32) {
    %c0_i32 = arith.constant 0 : i32
    %c0_i32_0 = arith.constant 0 : i32
    %c0_i32_1 = arith.constant 0 : i32
    return %c0_i32, %c0_i32_0 : i32, i32
  }
  func.func @transform_4(%arg0: i32) -> (i32, i32) {
    %c0_i32 = arith.constant 0 : i32
    %c0_i32_0 = arith.constant 0 : i32
    %c0_i32_1 = arith.constant 0 : i32
    return %c0_i32, %c0_i32_0 : i32, i32
  }
  func.func @transform_5(%arg0: i32) -> (i32, i32) {
    %c0_i32 = arith.constant 0 : i32
    %c0_i32_0 = arith.constant 0 : i32
    %c0_i32_1 = arith.constant 0 : i32
    return %c0_i32, %c0_i32_0 : i32, i32
  }
  func.func @transform_6(%arg0: i32) -> (i32, i32) {
    %c0_i32 = arith.constant 0 : i32
    %c0_i32_0 = arith.constant 0 : i32
    %c0_i32_1 = arith.constant 0 : i32
    return %c0_i32, %c0_i32_0 : i32, i32
  }
  func.func @transform_7(%arg0: i32) -> (i32, i32) {
    %c0_i32 = arith.constant 0 : i32
    %c0_i32_0 = arith.constant 0 : i32
    %c0_i32_1 = arith.constant 0 : i32
    return %c0_i32, %c0_i32_0 : i32, i32
  }
  func.func @transform_8(%arg0: i32) -> (i32, i32) {
    %c0_i32 = arith.constant 0 : i32
    %c0_i32_0 = arith.constant 0 : i32
    %c0_i32_1 = arith.constant 0 : i32
    return %c0_i32, %c0_i32_0 : i32, i32
  }
  func.func @transform_9(%arg0: i32) -> (i32, i32) {
    %c0_i32 = arith.constant 0 : i32
    %c0_i32_0 = arith.constant 0 : i32
    %c0_i32_1 = arith.constant 0 : i32
    return %c0_i32, %c0_i32_0 : i32, i32
  }
  func.func @transform_10(%arg0: i32) -> (i32, i32) {
    %c0_i32 = arith.constant 0 : i32
    %c0_i32_0 = arith.constant 0 : i32
    %c0_i32_1 = arith.constant 0 : i32
    return %c0_i32, %c0_i32_0 : i32, i32
  }
  func.func @transform_11(%arg0: i32) -> (i32, i32) {
    %c0_i32 = arith.constant 0 : i32
    %c0_i32_0 = arith.constant 0 : i32
    return %arg0, %c0_i32 : i32, i32
  }
}

</mosaic_0001>

<llo_original>
// kernel: _mlp_forward_jit.1
$region0: #{_mlp_forward_jit.1}
  #allocation0 [shape = 'u32[]', space=smem, size = 0x4, offset = 0x4, fixed_abs, tag = 'smem constant byte address 0x4 - core index']
  #allocation1 [shape = 'u32[144,128]{1,0:T(1,128)}', space=vmem, size = 0x12000, scoped, tag = 'internal scratch']
  %s0 = inlined_call_operand.vmem [shape: f32[16,128], index: 0, kind: input, shape index: {}]
  %s1 = inlined_call_operand.hbm [shape: bf16[128,128], index: 1, kind: input, shape index: {}]
  %s2 = inlined_call_operand.vmem [shape: f32[1,128], index: 2, kind: input, shape index: {}]
  %s3 = inlined_call_operand.hbm [shape: bf16[128,128], index: 3, kind: input, shape index: {}]
  %s4 = inlined_call_operand.vmem [shape: f32[1,128], index: 4, kind: input, shape index: {}]
  %s5 = inlined_call_operand.hbm [shape: bf16[128,128], index: 5, kind: input, shape index: {}]
  %s6 = inlined_call_operand.vmem [shape: f32[1,128], index: 6, kind: input, shape index: {}]
  %s7 = inlined_call_operand.hbm [shape: bf16[128,128], index: 7, kind: input, shape index: {}]
  %s8 = inlined_call_operand.vmem [shape: f32[1,128], index: 8, kind: input, shape index: {}]
  %s9 = inlined_call_operand.hbm [shape: bf16[128,128], index: 9, kind: input, shape index: {}]
  %s10 = inlined_call_operand.vmem [shape: f32[1,128], index: 10, kind: input, shape index: {}]
  %s11 = inlined_call_operand.vmem [shape: f32[16,128], index: 11, kind: output, shape index: {}]
  %s12 = sld [smem:[#allocation0]]
  $region74: #{_mlp_forward_jit.1} parent=0
    _
  %s14 = ssub.s32 1, %s12
  %s15 = scalar_select 0, %s14, %s12
  $region1: #{_mlp_forward_jit.1} parent=0
    #allocation2 [shape = 'u8[32768]{0}', space=vmem, size = 0x8000, scoped, tag = 'input window, operand 1, single buffered']
    #allocation3 [shape = 's32[1]{0}', space=sflag, size = 0x4, scoped, tag = 'scoped memory for _mlp_forward_jit.1']
    #allocation4 [shape = 'u8[32768]{0}', space=vmem, size = 0x8000, scoped, tag = 'input window, operand 3, single buffered']
    #allocation5 [shape = 's32[1]{0}', space=sflag, size = 0x4, scoped, tag = 'scoped memory for _mlp_forward_jit.1']
    #allocation6 [shape = 'u8[32768]{0}', space=vmem, size = 0x8000, scoped, tag = 'input window, operand 5, single buffered']
    #allocation7 [shape = 'u8[32768]{0}', space=vmem, size = 0x8000, scoped, tag = 'input window, operand 7, single buffered']
    #allocation8 [shape = 's32[1]{0}', space=sflag, size = 0x4, scoped, tag = 'scoped memory for _mlp_forward_jit.1']
    #allocation9 [shape = 'u8[32768]{0}', space=vmem, size = 0x8000, scoped, tag = 'input window, operand 9, single buffered']
    %16 = vsyncpa [#allocation3], 0
    %17 = vsyncpa [#allocation5], 0
    %18 = vsyncpa [#allocation8], 0
    // Predicated region
    $region2: #{_mlp_forward_jit.1} parent=1 // pred_check
      _
    $region3: #{_mlp_forward_jit.1} parent=1 // pred_check_branch
      %20 = sbr.rel (0) target = $region5
    $region4: #{_mlp_forward_jit.1} parent=1 // pred_region
      _
    $region5: #{_mlp_forward_jit.1} parent=1 // pred_fallthru
      _
    // Predicated region
    $region6: #{_mlp_forward_jit.1} parent=1 // pred_check
      _
    $region7: #{_mlp_forward_jit.1} parent=1 // pred_check_branch
      %22 = sbr.rel (0) target = $region9
    $region8: #{_mlp_forward_jit.1} parent=1 // pred_region
      %s24 = ssub.s32 1024, 1024
      %25 = vsyncadd [#allocation3], %s24
      %s26 = sshll.u32 [#allocation2], 4
      %s27 = int_to_ptr.vmem [resolvable:$true] %s26
      %32 = dma.hbm_to_vmem [thread:$0]  %s1, 1024, %s27, [#allocation3], 64, 64, 4
    $region9: #{_mlp_forward_jit.1} parent=1 // pred_fallthru
      _
    // Predicated region
    $region10: #{_mlp_forward_jit.1} parent=1 // pred_check
      _
    $region11: #{_mlp_forward_jit.1} parent=1 // pred_check_branch
      %34 = sbr.rel (0) target = $region13
    $region12: #{_mlp_forward_jit.1} parent=1 // pred_region
      _
    $region13: #{_mlp_forward_jit.1} parent=1 // pred_fallthru
      _
    // Predicated region
    $region14: #{_mlp_forward_jit.1} parent=1 // pred_check
      _
    $region15: #{_mlp_forward_jit.1} parent=1 // pred_check_branch
      %36 = sbr.rel (0) target = $region17
    $region16: #{_mlp_forward_jit.1} parent=1 // pred_region
      %s38 = ssub.s32 1024, 1024
      %39 = vsyncadd [#allocation5], %s38
      %s40 = sshll.u32 [#allocation4], 4
      %s41 = int_to_ptr.vmem [resolvable:$true] %s40
      %46 = dma.hbm_to_vmem [thread:$0]  %s3, 1024, %s41, [#allocation5], 64, 64, 4
    $region17: #{_mlp_forward_jit.1} parent=1 // pred_fallthru
      _
    // Predicated region
    $region18: #{_mlp_forward_jit.1} parent=1 // pred_check
      _
    $region19: #{_mlp_forward_jit.1} parent=1 // pred_check_branch
      %48 = sbr.rel (0) target = $region21
    $region20: #{_mlp_forward_jit.1} parent=1 // pred_region
      _
    $region21: #{_mlp_forward_jit.1} parent=1 // pred_fallthru
      _
    // Predicated region
    $region22: #{_mlp_forward_jit.1} parent=1 // pred_check
      _
    $region23: #{_mlp_forward_jit.1} parent=1 // pred_check_branch
      %50 = sbr.rel (0) target = $region25
    $region24: #{_mlp_forward_jit.1} parent=1 // pred_region
      %s52 = ssub.s32 1024, 1024
      %53 = vsyncadd [#allocation5], %s52
      %s54 = sshll.u32 [#allocation6], 4
      %s55 = int_to_ptr.vmem [resolvable:$true] %s54
      %60 = dma.hbm_to_vmem [thread:$0]  %s5, 1024, %s55, [#allocation5], 64, 64, 4
    $region25: #{_mlp_forward_jit.1} parent=1 // pred_fallthru
      _
    // Predicated region
    $region26: #{_mlp_forward_jit.1} parent=1 // pred_check
      _
    $region27: #{_mlp_forward_jit.1} parent=1 // pred_check_branch
      %62 = sbr.rel (0) target = $region29
    $region28: #{_mlp_forward_jit.1} parent=1 // pred_region
      _
    $region29: #{_mlp_forward_jit.1} parent=1 // pred_fallthru
      _
    // Predicated region
    $region30: #{_mlp_forward_jit.1} parent=1 // pred_check
      _
    $region31: #{_mlp_forward_jit.1} parent=1 // pred_check_branch
      %64 = sbr.rel (0) target = $region33
    $region32: #{_mlp_forward_jit.1} parent=1 // pred_region
      %s66 = ssub.s32 1024, 1024
      %67 = vsyncadd [#allocation8], %s66
      %s68 = sshll.u32 [#allocation7], 4
      %s69 = int_to_ptr.vmem [resolvable:$true] %s68
      %74 = dma.hbm_to_vmem [thread:$0]  %s7, 1024, %s69, [#allocation8], 64, 64, 4
    $region33: #{_mlp_forward_jit.1} parent=1 // pred_fallthru
      _
    // Predicated region
    $region34: #{_mlp_forward_jit.1} parent=1 // pred_check
      _
    $region35: #{_mlp_forward_jit.1} parent=1 // pred_check_branch
      %76 = sbr.rel (0) target = $region37
    $region36: #{_mlp_forward_jit.1} parent=1 // pred_region
      _
    $region37: #{_mlp_forward_jit.1} parent=1 // pred_fallthru
      _
    // Predicated region
    $region38: #{_mlp_forward_jit.1} parent=1 // pred_check
      _
    $region39: #{_mlp_forward_jit.1} parent=1 // pred_check_branch
      %78 = sbr.rel (0) target = $region41
    $region40: #{_mlp_forward_jit.1} parent=1 // pred_region
      %s80 = ssub.s32 1024, 1024
      %81 = vsyncadd [#allocation8], %s80
      %s82 = sshll.u32 [#allocation9], 4
      %s83 = int_to_ptr.vmem [resolvable:$true] %s82
      %88 = dma.hbm_to_vmem [thread:$0]  %s9, 1024, %s83, [#allocation8], 64, 64, 4
    $region41: #{_mlp_forward_jit.1} parent=1 // pred_fallthru
      _
    // Predicated region
    $region42: #{_mlp_forward_jit.1} parent=1 // pred_check
      _
    $region43: #{_mlp_forward_jit.1} parent=1 // pred_check_branch
      %90 = sbr.rel (0) target = $region45
    $region44: #{_mlp_forward_jit.1} parent=1 // pred_region
      _
    $region45: #{_mlp_forward_jit.1} parent=1 // pred_fallthru
      _
    // Predicated region
    $region46: #{_mlp_forward_jit.1} parent=1 // pred_check
      _
    $region47: #{_mlp_forward_jit.1} parent=1 // pred_check_branch
      %92 = sbr.rel (0) target = $region49
    $region48: #{_mlp_forward_jit.1} parent=1 // pred_region
      %93 = dma.done [#allocation3], 1024
    $region49: #{_mlp_forward_jit.1} parent=1 // pred_fallthru
      _
    // Predicated region
    $region50: #{_mlp_forward_jit.1} parent=1 // pred_check
      _
    $region51: #{_mlp_forward_jit.1} parent=1 // pred_check_branch
      %95 = sbr.rel (0) target = $region53
    $region52: #{_mlp_forward_jit.1} parent=1 // pred_region
      %96 = dma.done [#allocation5], 1024
    $region53: #{_mlp_forward_jit.1} parent=1 // pred_fallthru
      _
    // Predicated region
    $region54: #{_mlp_forward_jit.1} parent=1 // pred_check
      _
    $region55: #{_mlp_forward_jit.1} parent=1 // pred_check_branch
      %98 = sbr.rel (0) target = $region57
    $region56: #{_mlp_forward_jit.1} parent=1 // pred_region
      %99 = dma.done [#allocation5], 1024
    $region57: #{_mlp_forward_jit.1} parent=1 // pred_fallthru
      _
    // Predicated region
    $region58: #{_mlp_forward_jit.1} parent=1 // pred_check
      _
    $region59: #{_mlp_forward_jit.1} parent=1 // pred_check_branch
      %101 = sbr.rel (0) target = $region61
    $region60: #{_mlp_forward_jit.1} parent=1 // pred_region
      %102 = dma.done [#allocation8], 1024
    $region61: #{_mlp_forward_jit.1} parent=1 // pred_fallthru
      _
    // Predicated region
    $region62: #{_mlp_forward_jit.1} parent=1 // pred_check
      _
    $region63: #{_mlp_forward_jit.1} parent=1 // pred_check_branch
      %104 = sbr.rel (0) target = $region65
    $region64: #{_mlp_forward_jit.1} parent=1 // pred_region
      %105 = dma.done [#allocation8], 1024
    $region65: #{_mlp_forward_jit.1} parent=1 // pred_fallthru
      _
    %v107 = vld [vmem:[%s0] sm:$0xff]
    %v108 = vld [vmem:[%s0 + $0x8] sm:$0xff]
    %v109 = vld [vmem:[#allocation2] sm:$0xf]
    %v110 = vld [vmem:[#allocation2 + $0x4] sm:$0xf]
    %v111 = vld [vmem:[#allocation2 + $0x8] sm:$0xf]
    %v112 = vld [vmem:[#allocation2 + $0xc] sm:$0xf]
    %v113 = vld [vmem:[#allocation2 + $0x10] sm:$0xf]
    %v114 = vld [vmem:[#allocation2 + $0x14] sm:$0xf]
    %v115 = vld [vmem:[#allocation2 + $0x18] sm:$0xf]
    %v116 = vld [vmem:[#allocation2 + $0x1c] sm:$0xf]
    %v117 = vld [vmem:[#allocation2 + $0x20] sm:$0xf]
    %v118 = vld [vmem:[#allocation2 + $0x24] sm:$0xf]
    %v119 = vld [vmem:[#allocation2 + $0x28] sm:$0xf]
    %v120 = vld [vmem:[#allocation2 + $0x2c] sm:$0xf]
    %v121 = vld [vmem:[#allocation2 + $0x30] sm:$0xf]
    %v122 = vld [vmem:[#allocation2 + $0x34] sm:$0xf]
    %v123 = vld [vmem:[#allocation2 + $0x38] sm:$0xf]
    %v124 = vld [vmem:[#allocation2 + $0x3c] sm:$0xf]
    %v125 = vld [vmem:[%s2] sm:$0x1]
    %v126 = vpack.c.bf16 %v108, %v107
    %v128 = vlaneseq
    %v129 = vshrl.u32 %v128, 7
    %v130 = vsub.s32 0, %v129
    %v131 = vrot.slane %v125, %v130
    %v149 = vunpack.c.l.b16 %v109
    %v150 = vunpack.c.l.b16 %v110
    %v151 = vunpack.c.l.b16 %v111
    %v152 = vunpack.c.l.b16 %v112
    %v153 = vunpack.c.l.b16 %v113
    %v154 = vunpack.c.l.b16 %v114
    %v155 = vunpack.c.l.b16 %v115
    %v156 = vunpack.c.l.b16 %v116
    %v157 = vunpack.c.l.b16 %v117
    %v158 = vunpack.c.l.b16 %v118
    %v159 = vunpack.c.l.b16 %v119
    %v160 = vunpack.c.l.b16 %v120
    %v161 = vunpack.c.l.b16 %v121
    %v162 = vunpack.c.l.b16 %v122
    %v163 = vunpack.c.l.b16 %v123
    %v164 = vunpack.c.l.b16 %v124
    %v165 = vpack.c.b16 %v150, %v149
    %v166 = vpack.c.b16 %v152, %v151
    %v167 = vpack.c.b16 %v154, %v153
    %v168 = vpack.c.b16 %v156, %v155
    %v169 = vpack.c.b16 %v158, %v157
    %v170 = vpack.c.b16 %v160, %v159
    %v171 = vpack.c.b16 %v162, %v161
    %v172 = vpack.c.b16 %v164, %v163
    %181 = vmatprep.subr.bf16.mxu0 0
    %182 = vmatpush1.bf16.msra.mxu0 %v172
    %183 = vmatprep.subr.bf16.mxu0 0
    %184 = vmatpush1.bf16.msra.mxu0 %v171
    %185 = vmatprep.subr.bf16.mxu0 0
    %186 = vmatpush1.bf16.msra.mxu0 %v170
    %187 = vmatprep.subr.bf16.mxu0 0
    %188 = vmatpush1.bf16.msra.mxu0 %v169
    %189 = vmatprep.subr.bf16.mxu0 0
    %190 = vmatpush1.bf16.msra.mxu0 %v168
    %191 = vmatprep.subr.bf16.mxu0 0
    %192 = vmatpush1.bf16.msra.mxu0 %v167
    %193 = vmatprep.subr.bf16.mxu0 0
    %194 = vmatpush1.bf16.msra.mxu0 %v166
    %195 = vmatprep.subr.bf16.mxu0 0
    %196 = vmatpush1.bf16.msra.mxu0 %v165
    %197 = vmatprep.subr.bf16.mxu0 0
    %198 = vmatpush2.bf16.msra.mxu0 0
    %199 = vmatprep.subr.bf16.mxu0 0
    %200 = vmatpush2.bf16.msra.mxu0 0
    %201 = vmatprep.subr.bf16.mxu0 0
    %202 = vmatpush2.bf16.msra.mxu0 0
    %203 = vmatprep.subr.bf16.mxu0 0
    %204 = vmatpush2.bf16.msra.mxu0 0
    %205 = vmatprep.subr.bf16.mxu0 0
    %206 = vmatpush2.bf16.msra.mxu0 0
    %207 = vmatprep.subr.bf16.mxu0 0
    %208 = vmatpush2.bf16.msra.mxu0 0
    %209 = vmatprep.subr.bf16.mxu0 0
    %210 = vmatpush2.bf16.msra.mxu0 0
    %211 = vmatprep.subr.bf16.mxu0 0
    %212 = vmatpush2.bf16.msra.mxu0 0
    %213 = vmatprep.mubr.bf16.mxu0 0
    %214 = vmatmul.mubr.bf16.gmra.mxu0 %v126
    %v215 = vpop.f32.mrf.mxu0
    %v216 = vadd.f32 %v131, %v215
    %v217 = vpop.f32.mrf.mxu0
    %v218 = vpop.f32.mrf.mxu0
    %v219 = vadd.f32 %v131, %v218
    %v220 = vpop.f32.mrf.mxu0
    %221 = vdwg.mxu0
    %v222 = vmax.f32 %v216, 0.0
    %v223 = vmax.f32 %v219, 0.0
    %v224 = vld [vmem:[#allocation4] sm:$0xf]
    %v225 = vld [vmem:[#allocation4 + $0x4] sm:$0xf]
    %v226 = vld [vmem:[#allocation4 + $0x8] sm:$0xf]
    %v227 = vld [vmem:[#allocation4 + $0xc] sm:$0xf]
    %v228 = vld [vmem:[#allocation4 + $0x10] sm:$0xf]
    %v229 = vld [vmem:[#allocation4 + $0x14] sm:$0xf]
    %v230 = vld [vmem:[#allocation4 + $0x18] sm:$0xf]
    %v231 = vld [vmem:[#allocation4 + $0x1c] sm:$0xf]
    %v232 = vld [vmem:[#allocation4 + $0x20] sm:$0xf]
    %v233 = vld [vmem:[#allocation4 + $0x24] sm:$0xf]
    %v234 = vld [vmem:[#allocation4 + $0x28] sm:$0xf]
    %v235 = vld [vmem:[#allocation4 + $0x2c] sm:$0xf]
    %v236 = vld [vmem:[#allocation4 + $0x30] sm:$0xf]
    %v237 = vld [vmem:[#allocation4 + $0x34] sm:$0xf]
    %v238 = vld [vmem:[#allocation4 + $0x38] sm:$0xf]
    %v239 = vld [vmem:[#allocation4 + $0x3c] sm:$0xf]
    %v240 = vld [vmem:[%s4] sm:$0x1]
    %v241 = vpack.c.bf16 %v223, %v222
    %v243 = vlaneseq
    %v244 = vshrl.u32 %v243, 7
    %v245 = vsub.s32 0, %v244
    %v246 = vrot.slane %v240, %v245
    %v264 = vunpack.c.l.b16 %v224
    %v265 = vunpack.c.l.b16 %v225
    %v266 = vunpack.c.l.b16 %v226
    %v267 = vunpack.c.l.b16 %v227
    %v268 = vunpack.c.l.b16 %v228
    %v269 = vunpack.c.l.b16 %v229
    %v270 = vunpack.c.l.b16 %v230
    %v271 = vunpack.c.l.b16 %v231
    %v272 = vunpack.c.l.b16 %v232
    %v273 = vunpack.c.l.b16 %v233
    %v274 = vunpack.c.l.b16 %v234
    %v275 = vunpack.c.l.b16 %v235
    %v276 = vunpack.c.l.b16 %v236
    %v277 = vunpack.c.l.b16 %v237
    %v278 = vunpack.c.l.b16 %v238
    %v279 = vunpack.c.l.b16 %v239
    %v280 = vpack.c.b16 %v265, %v264
    %v281 = vpack.c.b16 %v267, %v266
    %v282 = vpack.c.b16 %v269, %v268
    %v283 = vpack.c.b16 %v271, %v270
    %v284 = vpack.c.b16 %v273, %v272
    %v285 = vpack.c.b16 %v275, %v274
    %v286 = vpack.c.b16 %v277, %v276
    %v287 = vpack.c.b16 %v279, %v278
    %296 = vmatprep.subr.bf16.mxu0 0
    %297 = vmatpush1.bf16.msra.mxu0 %v287
    %298 = vmatprep.subr.bf16.mxu0 0
    %299 = vmatpush1.bf16.msra.mxu0 %v286
    %300 = vmatprep.subr.bf16.mxu0 0
    %301 = vmatpush1.bf16.msra.mxu0 %v285
    %302 = vmatprep.subr.bf16.mxu0 0
    %303 = vmatpush1.bf16.msra.mxu0 %v284
    %304 = vmatprep.subr.bf16.mxu0 0
    %305 = vmatpush1.bf16.msra.mxu0 %v283
    %306 = vmatprep.subr.bf16.mxu0 0
    %307 = vmatpush1.bf16.msra.mxu0 %v282
    %308 = vmatprep.subr.bf16.mxu0 0
    %309 = vmatpush1.bf16.msra.mxu0 %v281
    %310 = vmatprep.subr.bf16.mxu0 0
    %311 = vmatpush1.bf16.msra.mxu0 %v280
    %312 = vmatprep.subr.bf16.mxu0 0
    %313 = vmatpush2.bf16.msra.mxu0 0
    %314 = vmatprep.subr.bf16.mxu0 0
    %315 = vmatpush2.bf16.msra.mxu0 0
    %316 = vmatprep.subr.bf16.mxu0 0
    %317 = vmatpush2.bf16.msra.mxu0 0
    %318 = vmatprep.subr.bf16.mxu0 0
    %319 = vmatpush2.bf16.msra.mxu0 0
    %320 = vmatprep.subr.bf16.mxu0 0
    %321 = vmatpush2.bf16.msra.mxu0 0
    %322 = vmatprep.subr.bf16.mxu0 0
    %323 = vmatpush2.bf16.msra.mxu0 0
    %324 = vmatprep.subr.bf16.mxu0 0
    %325 = vmatpush2.bf16.msra.mxu0 0
    %326 = vmatprep.subr.bf16.mxu0 0
    %327 = vmatpush2.bf16.msra.mxu0 0
    %328 = vmatprep.mubr.bf16.mxu0 0
    %329 = vmatmul.mubr.bf16.gmra.mxu0 %v241
    %v330 = vpop.f32.mrf.mxu0
    %v331 = vadd.f32 %v246, %v330
    %v332 = vpop.f32.mrf.mxu0
    %v333 = vpop.f32.mrf.mxu0
    %v334 = vadd.f32 %v246, %v333
    %v335 = vpop.f32.mrf.mxu0
    %336 = vdwg.mxu0
    %v337 = vmax.f32 %v331, 0.0
    %v338 = vmax.f32 %v334, 0.0
    %v339 = vld [vmem:[#allocation6] sm:$0xf]
    %v340 = vld [vmem:[#allocation6 + $0x4] sm:$0xf]
    %v341 = vld [vmem:[#allocation6 + $0x8] sm:$0xf]
    %v342 = vld [vmem:[#allocation6 + $0xc] sm:$0xf]
    %v343 = vld [vmem:[#allocation6 + $0x10] sm:$0xf]
    %v344 = vld [vmem:[#allocation6 + $0x14] sm:$0xf]
    %v345 = vld [vmem:[#allocation6 + $0x18] sm:$0xf]
    %v346 = vld [vmem:[#allocation6 + $0x1c] sm:$0xf]
    %v347 = vld [vmem:[#allocation6 + $0x20] sm:$0xf]
    %v348 = vld [vmem:[#allocation6 + $0x24] sm:$0xf]
    %v349 = vld [vmem:[#allocation6 + $0x28] sm:$0xf]
    %v350 = vld [vmem:[#allocation6 + $0x2c] sm:$0xf]
    %v351 = vld [vmem:[#allocation6 + $0x30] sm:$0xf]
    %v352 = vld [vmem:[#allocation6 + $0x34] sm:$0xf]
    %v353 = vld [vmem:[#allocation6 + $0x38] sm:$0xf]
    %v354 = vld [vmem:[#allocation6 + $0x3c] sm:$0xf]
    %v355 = vld [vmem:[%s6] sm:$0x1]
    %v356 = vpack.c.bf16 %v338, %v337
    %v358 = vlaneseq
    %v359 = vshrl.u32 %v358, 7
    %v360 = vsub.s32 0, %v359
    %v361 = vrot.slane %v355, %v360
    %v379 = vunpack.c.l.b16 %v339
    %v380 = vunpack.c.l.b16 %v340
    %v381 = vunpack.c.l.b16 %v341
    %v382 = vunpack.c.l.b16 %v342
    %v383 = vunpack.c.l.b16 %v343
    %v384 = vunpack.c.l.b16 %v344
    %v385 = vunpack.c.l.b16 %v345
    %v386 = vunpack.c.l.b16 %v346
    %v387 = vunpack.c.l.b16 %v347
    %v388 = vunpack.c.l.b16 %v348
    %v389 = vunpack.c.l.b16 %v349
    %v390 = vunpack.c.l.b16 %v350
    %v391 = vunpack.c.l.b16 %v351
    %v392 = vunpack.c.l.b16 %v352
    %v393 = vunpack.c.l.b16 %v353
    %v394 = vunpack.c.l.b16 %v354
    %v395 = vpack.c.b16 %v380, %v379
    %v396 = vpack.c.b16 %v382, %v381
    %v397 = vpack.c.b16 %v384, %v383
    %v398 = vpack.c.b16 %v386, %v385
    %v399 = vpack.c.b16 %v388, %v387
    %v400 = vpack.c.b16 %v390, %v389
    %v401 = vpack.c.b16 %v392, %v391
    %v402 = vpack.c.b16 %v394, %v393
    %411 = vmatprep.subr.bf16.mxu0 0
    %412 = vmatpush1.bf16.msra.mxu0 %v402
    %413 = vmatprep.subr.bf16.mxu0 0
    %414 = vmatpush1.bf16.msra.mxu0 %v401
    %415 = vmatprep.subr.bf16.mxu0 0
    %416 = vmatpush1.bf16.msra.mxu0 %v400
    %417 = vmatprep.subr.bf16.mxu0 0
    %418 = vmatpush1.bf16.msra.mxu0 %v399
    %419 = vmatprep.subr.bf16.mxu0 0
    %420 = vmatpush1.bf16.msra.mxu0 %v398
    %421 = vmatprep.subr.bf16.mxu0 0
    %422 = vmatpush1.bf16.msra.mxu0 %v397
    %423 = vmatprep.subr.bf16.mxu0 0
    %424 = vmatpush1.bf16.msra.mxu0 %v396
    %425 = vmatprep.subr.bf16.mxu0 0
    %426 = vmatpush1.bf16.msra.mxu0 %v395
    %427 = vmatprep.subr.bf16.mxu0 0
    %428 = vmatpush2.bf16.msra.mxu0 0
    %429 = vmatprep.subr.bf16.mxu0 0
    %430 = vmatpush2.bf16.msra.mxu0 0
    %431 = vmatprep.subr.bf16.mxu0 0
    %432 = vmatpush2.bf16.msra.mxu0 0
    %433 = vmatprep.subr.bf16.mxu0 0
    %434 = vmatpush2.bf16.msra.mxu0 0
    %435 = vmatprep.subr.bf16.mxu0 0
    %436 = vmatpush2.bf16.msra.mxu0 0
    %437 = vmatprep.subr.bf16.mxu0 0
    %438 = vmatpush2.bf16.msra.mxu0 0
    %439 = vmatprep.subr.bf16.mxu0 0
    %440 = vmatpush2.bf16.msra.mxu0 0
    %441 = vmatprep.subr.bf16.mxu0 0
    %442 = vmatpush2.bf16.msra.mxu0 0
    %443 = vmatprep.mubr.bf16.mxu0 0
    %444 = vmatmul.mubr.bf16.gmra.mxu0 %v356
    %v445 = vpop.f32.mrf.mxu0
    %v446 = vadd.f32 %v361, %v445
    %v447 = vpop.f32.mrf.mxu0
    %v448 = vpop.f32.mrf.mxu0
    %v449 = vadd.f32 %v361, %v448
    %v450 = vpop.f32.mrf.mxu0
    %451 = vdwg.mxu0
    %v452 = vmax.f32 %v446, 0.0
    %v453 = vmax.f32 %v449, 0.0
    %v454 = vld [vmem:[#allocation7] sm:$0xf]
    %v455 = vld [vmem:[#allocation7 + $0x4] sm:$0xf]
    %v456 = vld [vmem:[#allocation7 + $0x8] sm:$0xf]
    %v457 = vld [vmem:[#allocation7 + $0xc] sm:$0xf]
    %v458 = vld [vmem:[#allocation7 + $0x10] sm:$0xf]
    %v459 = vld [vmem:[#allocation7 + $0x14] sm:$0xf]
    %v460 = vld [vmem:[#allocation7 + $0x18] sm:$0xf]
    %v461 = vld [vmem:[#allocation7 + $0x1c] sm:$0xf]
    %v462 = vld [vmem:[#allocation7 + $0x20] sm:$0xf]
    %v463 = vld [vmem:[#allocation7 + $0x24] sm:$0xf]
    %v464 = vld [vmem:[#allocation7 + $0x28] sm:$0xf]
    %v465 = vld [vmem:[#allocation7 + $0x2c] sm:$0xf]
    %v466 = vld [vmem:[#allocation7 + $0x30] sm:$0xf]
    %v467 = vld [vmem:[#allocation7 + $0x34] sm:$0xf]
    %v468 = vld [vmem:[#allocation7 + $0x38] sm:$0xf]
    %v469 = vld [vmem:[#allocation7 + $0x3c] sm:$0xf]
    %v470 = vld [vmem:[%s8] sm:$0x1]
    %v471 = vpack.c.bf16 %v453, %v452
    %v473 = vlaneseq
    %v474 = vshrl.u32 %v473, 7
    %v475 = vsub.s32 0, %v474
    %v476 = vrot.slane %v470, %v475
    %v494 = vunpack.c.l.b16 %v454
    %v495 = vunpack.c.l.b16 %v455
    %v496 = vunpack.c.l.b16 %v456
    %v497 = vunpack.c.l.b16 %v457
    %v498 = vunpack.c.l.b16 %v458
    %v499 = vunpack.c.l.b16 %v459
    %v500 = vunpack.c.l.b16 %v460
    %v501 = vunpack.c.l.b16 %v461
    %v502 = vunpack.c.l.b16 %v462
    %v503 = vunpack.c.l.b16 %v463
    %v504 = vunpack.c.l.b16 %v464
    %v505 = vunpack.c.l.b16 %v465
    %v506 = vunpack.c.l.b16 %v466
    %v507 = vunpack.c.l.b16 %v467
    %v508 = vunpack.c.l.b16 %v468
    %v509 = vunpack.c.l.b16 %v469
    %v510 = vpack.c.b16 %v495, %v494
    %v511 = vpack.c.b16 %v497, %v496
    %v512 = vpack.c.b16 %v499, %v498
    %v513 = vpack.c.b16 %v501, %v500
    %v514 = vpack.c.b16 %v503, %v502
    %v515 = vpack.c.b16 %v505, %v504
    %v516 = vpack.c.b16 %v507, %v506
    %v517 = vpack.c.b16 %v509, %v508
    %526 = vmatprep.subr.bf16.mxu0 0
    %527 = vmatpush1.bf16.msra.mxu0 %v517
    %528 = vmatprep.subr.bf16.mxu0 0
    %529 = vmatpush1.bf16.msra.mxu0 %v516
    %530 = vmatprep.subr.bf16.mxu0 0
    %531 = vmatpush1.bf16.msra.mxu0 %v515
    %532 = vmatprep.subr.bf16.mxu0 0
    %533 = vmatpush1.bf16.msra.mxu0 %v514
    %534 = vmatprep.subr.bf16.mxu0 0
    %535 = vmatpush1.bf16.msra.mxu0 %v513
    %536 = vmatprep.subr.bf16.mxu0 0
    %537 = vmatpush1.bf16.msra.mxu0 %v512
    %538 = vmatprep.subr.bf16.mxu0 0
    %539 = vmatpush1.bf16.msra.mxu0 %v511
    %540 = vmatprep.subr.bf16.mxu0 0
    %541 = vmatpush1.bf16.msra.mxu0 %v510
    %542 = vmatprep.subr.bf16.mxu0 0
    %543 = vmatpush2.bf16.msra.mxu0 0
    %544 = vmatprep.subr.bf16.mxu0 0
    %545 = vmatpush2.bf16.msra.mxu0 0
    %546 = vmatprep.subr.bf16.mxu0 0
    %547 = vmatpush2.bf16.msra.mxu0 0
    %548 = vmatprep.subr.bf16.mxu0 0
    %549 = vmatpush2.bf16.msra.mxu0 0
    %550 = vmatprep.subr.bf16.mxu0 0
    %551 = vmatpush2.bf16.msra.mxu0 0
    %552 = vmatprep.subr.bf16.mxu0 0
    %553 = vmatpush2.bf16.msra.mxu0 0
    %554 = vmatprep.subr.bf16.mxu0 0
    %555 = vmatpush2.bf16.msra.mxu0 0
    %556 = vmatprep.subr.bf16.mxu0 0
    %557 = vmatpush2.bf16.msra.mxu0 0
    %558 = vmatprep.mubr.bf16.mxu0 0
    %559 = vmatmul.mubr.bf16.gmra.mxu0 %v471
    %v560 = vpop.f32.mrf.mxu0
    %v561 = vadd.f32 %v476, %v560
    %v562 = vpop.f32.mrf.mxu0
    %v563 = vpop.f32.mrf.mxu0
    %v564 = vadd.f32 %v476, %v563
    %v565 = vpop.f32.mrf.mxu0
    %566 = vdwg.mxu0
    %v567 = vmax.f32 %v561, 0.0
    %v568 = vmax.f32 %v564, 0.0
    %v569 = vadd.f32 %v567, %v337
    %v570 = vadd.f32 %v568, %v338
    %v571 = vld [vmem:[#allocation9] sm:$0xf]
    %v572 = vld [vmem:[#allocation9 + $0x4] sm:$0xf]
    %v573 = vld [vmem:[#allocation9 + $0x8] sm:$0xf]
    %v574 = vld [vmem:[#allocation9 + $0xc] sm:$0xf]
    %v575 = vld [vmem:[#allocation9 + $0x10] sm:$0xf]
    %v576 = vld [vmem:[#allocation9 + $0x14] sm:$0xf]
    %v577 = vld [vmem:[#allocation9 + $0x18] sm:$0xf]
    %v578 = vld [vmem:[#allocation9 + $0x1c] sm:$0xf]
    %v579 = vld [vmem:[#allocation9 + $0x20] sm:$0xf]
    %v580 = vld [vmem:[#allocation9 + $0x24] sm:$0xf]
    %v581 = vld [vmem:[#allocation9 + $0x28] sm:$0xf]
    %v582 = vld [vmem:[#allocation9 + $0x2c] sm:$0xf]
    %v583 = vld [vmem:[#allocation9 + $0x30] sm:$0xf]
    %v584 = vld [vmem:[#allocation9 + $0x34] sm:$0xf]
    %v585 = vld [vmem:[#allocation9 + $0x38] sm:$0xf]
    %v586 = vld [vmem:[#allocation9 + $0x3c] sm:$0xf]
    %v587 = vld [vmem:[%s10] sm:$0x1]
    %v588 = vpack.c.bf16 %v570, %v569
    %v590 = vlaneseq
    %v591 = vshrl.u32 %v590, 7
    %v592 = vsub.s32 0, %v591
    %v593 = vrot.slane %v587, %v592
    %v611 = vunpack.c.l.b16 %v571
    %v612 = vunpack.c.l.b16 %v572
    %v613 = vunpack.c.l.b16 %v573
    %v614 = vunpack.c.l.b16 %v574
    %v615 = vunpack.c.l.b16 %v575
    %v616 = vunpack.c.l.b16 %v576
    %v617 = vunpack.c.l.b16 %v577
    %v618 = vunpack.c.l.b16 %v578
    %v619 = vunpack.c.l.b16 %v579
    %v620 = vunpack.c.l.b16 %v580
    %v621 = vunpack.c.l.b16 %v581
    %v622 = vunpack.c.l.b16 %v582
    %v623 = vunpack.c.l.b16 %v583
    %v624 = vunpack.c.l.b16 %v584
    %v625 = vunpack.c.l.b16 %v585
    %v626 = vunpack.c.l.b16 %v586
    %v627 = vpack.c.b16 %v612, %v611
    %v628 = vpack.c.b16 %v614, %v613
    %v629 = vpack.c.b16 %v616, %v615
    %v630 = vpack.c.b16 %v618, %v617
    %v631 = vpack.c.b16 %v620, %v619
    %v632 = vpack.c.b16 %v622, %v621
    %v633 = vpack.c.b16 %v624, %v623
    %v634 = vpack.c.b16 %v626, %v625
    %643 = vmatprep.subr.bf16.mxu0 0
    %644 = vmatpush1.bf16.msra.mxu0 %v634
    %645 = vmatprep.subr.bf16.mxu0 0
    %646 = vmatpush1.bf16.msra.mxu0 %v633
    %647 = vmatprep.subr.bf16.mxu0 0
    %648 = vmatpush1.bf16.msra.mxu0 %v632
    %649 = vmatprep.subr.bf16.mxu0 0
    %650 = vmatpush1.bf16.msra.mxu0 %v631
    %651 = vmatprep.subr.bf16.mxu0 0
    %652 = vmatpush1.bf16.msra.mxu0 %v630
    %653 = vmatprep.subr.bf16.mxu0 0
    %654 = vmatpush1.bf16.msra.mxu0 %v629
    %655 = vmatprep.subr.bf16.mxu0 0
    %656 = vmatpush1.bf16.msra.mxu0 %v628
    %657 = vmatprep.subr.bf16.mxu0 0
    %658 = vmatpush1.bf16.msra.mxu0 %v627
    %659 = vmatprep.subr.bf16.mxu0 0
    %660 = vmatpush2.bf16.msra.mxu0 0
    %661 = vmatprep.subr.bf16.mxu0 0
    %662 = vmatpush2.bf16.msra.mxu0 0
    %663 = vmatprep.subr.bf16.mxu0 0
    %664 = vmatpush2.bf16.msra.mxu0 0
    %665 = vmatprep.subr.bf16.mxu0 0
    %666 = vmatpush2.bf16.msra.mxu0 0
    %667 = vmatprep.subr.bf16.mxu0 0
    %668 = vmatpush2.bf16.msra.mxu0 0
    %669 = vmatprep.subr.bf16.mxu0 0
    %670 = vmatpush2.bf16.msra.mxu0 0
    %671 = vmatprep.subr.bf16.mxu0 0
    %672 = vmatpush2.bf16.msra.mxu0 0
    %673 = vmatprep.subr.bf16.mxu0 0
    %674 = vmatpush2.bf16.msra.mxu0 0
    %675 = vmatprep.mubr.bf16.mxu0 0
    %676 = vmatmul.mubr.bf16.gmra.mxu0 %v588
    %v677 = vpop.f32.mrf.mxu0
    %v678 = vadd.f32 %v593, %v677
    %v679 = vpop.f32.mrf.mxu0
    %v680 = vpop.f32.mrf.mxu0
    %v681 = vadd.f32 %v593, %v680
    %v682 = vpop.f32.mrf.mxu0
    %683 = vdwg.mxu0
    %v684 = vxor.u32 %v678, 2147483648
    %v685 = vxor.u32 %v681, 2147483648
    %v686 = vmul.f32 %v684, 1.442695
    %v687 = vpow.pop %v686
    %v688 = vmul.f32 %v685, 1.442695
    %v689 = vpow.pop %v688
    %v690 = vadd.f32 %v687, 1.0
    %v691 = vadd.f32 %v689, 1.0
    %v692 = vrcp.pop %v690
    %v693 = vmul.f32 1.0, %v692
    %v694 = vrcp.pop %v691
    %v695 = vmul.f32 1.0, %v694
    %696 = vst [vmem:[%s11] sm:$0xff] %v693
    %697 = vst [vmem:[%s11 + $0x8] sm:$0xff] %v695
    // Predicated region
    $region66: #{_mlp_forward_jit.1} parent=1 // pred_check
      _
    $region67: #{_mlp_forward_jit.1} parent=1 // pred_check_branch
      %699 = sbr.rel (0) target = $region69
    $region68: #{_mlp_forward_jit.1} parent=1 // pred_region
      _
    $region69: #{_mlp_forward_jit.1} parent=1 // pred_fallthru
      _
    // Predicated region
    $region70: #{_mlp_forward_jit.1} parent=1 // pred_check
      _
    $region71: #{_mlp_forward_jit.1} parent=1 // pred_check_branch
      %701 = sbr.rel (0) target = $region73
    $region72: #{_mlp_forward_jit.1} parent=1 // pred_region
      _
    $region73: #{_mlp_forward_jit.1} parent=1 // pred_fallthru
      _
    %702 = vsyncpa [#allocation3], 1
    %703 = vsyncpa [#allocation5], 1
    %704 = vsyncpa [#allocation8], 1

</llo_original>
